<compile_context>
chip_gen: v7x
topology: tpu7x:2x2x1
jax: 0.10.0
libtpu: 0.0.40
codegen_flags: <defaults>
</compile_context>

<pallas_src>
import functools
import math

import jax
import jax.numpy as jnp
from jax import lax
from jax.experimental import pallas as pl
from jax.experimental.pallas import tpu as pltpu


# ----------------------------------------------------------------------------
# Parameter / buffer setup (plain JAX glue, mirrors nn.Module.__init__)
# ----------------------------------------------------------------------------
def build_positional_encoding(max_len: int, d_model: int, dtype=jnp.float32):
    """Deterministic sin/cos table, identical formula to the PyTorch module."""
    position = jnp.arange(0, max_len, dtype=jnp.float32)[:, None]          # (max_len, 1)
    div_term = jnp.exp(
        jnp.arange(0, d_model, 2, dtype=jnp.float32)
        * (-(math.log(10000.0) / d_model))
    )                                                                       # (d_model//2,)
    angles = position * div_term                                            # (max_len, d_model//2)
    pe = jnp.zeros((max_len, d_model), dtype=jnp.float32)
    pe = pe.at[:, 0::2].set(jnp.sin(angles))
    pe = pe.at[:, 1::2].set(jnp.cos(angles))
    # Build in the model compute dtype so the kernel never casts per element.
    return pe.astype(dtype)                                                 # (max_len, d_model)


# ----------------------------------------------------------------------------
# Counter-based hash "PRNG" (platform-agnostic, tiling-independent dropout mask)
# ----------------------------------------------------------------------------
def _hash_u32(idx_u32, seed_u32):
    """Murmur3-style finalizer; maps (element index, seed) -> uniform uint32."""
    x = idx_u32 ^ (seed_u32 * jnp.uint32(0x9E3779B9))
    x = (x ^ (x >> 16)) * jnp.uint32(0x7FEB352D)
    x = (x ^ (x >> 15)) * jnp.uint32(0x846CA68B)
    return x ^ (x >> 16)


# ----------------------------------------------------------------------------
# Pallas kernel bodies
# ----------------------------------------------------------------------------
def _pe_add_kernel(x_ref, pe_ref, o_ref):
    # x_ref/o_ref: (tile_b, tile_r, C); pe_ref: (tile_r, C) broadcast over batch.
    o_ref[...] = x_ref[...] + pe_ref[...]


def _pe_add_dropout_kernel(seed_ref, x_ref, pe_ref, o_ref, *,
                           rows_per_batch, row_width, keep_threshold, scale):
    y = x_ref[...] + pe_ref[...]
    tb, tr, _ = y.shape
    # Global element index (same numbering as the original (B, S, D) layout),
    # so the mask does not depend on tile sizes or the grid layout.
    b_idx = lax.broadcasted_iota(jnp.int32, y.shape, 0) + pl.program_id(1) * tb
    r_idx = lax.broadcasted_iota(jnp.int32, y.shape, 1) + pl.program_id(0) * tr
    c_idx = lax.broadcasted_iota(jnp.int32, y.shape, 2)
    idx = (b_idx * rows_per_batch + r_idx) * row_width + c_idx
    seed_u = seed_ref[0].astype(jnp.uint32)
    bits = _hash_u32(idx.astype(jnp.uint32), seed_u)
    keep = bits >= jnp.uint32(keep_threshold)       # P(keep) = 1 - p, pure int compare
    o_ref[...] = jnp.where(keep, y * jnp.asarray(scale, y.dtype), jnp.zeros_like(y))


# ----------------------------------------------------------------------------
# Tiling helpers
# ----------------------------------------------------------------------------
def _tile_target_bytes():
    """Per-generation x-block byte target (~6-8 MiB), sized off physical VMEM."""
    try:
        vmem = pltpu.get_tpu_info().vmem_capacity_bytes
    except Exception:
        vmem = 64 << 20   # conservative (v7x-sized) default
    return max(1 << 20, min(8 << 20, vmem // 10))


def _vmem_limit_bytes():
    try:
        vmem = pltpu.get_tpu_info().vmem_capacity_bytes
    except Exception:
        vmem = 64 << 20
    return min(48 << 20, (vmem * 3) // 4)


def _round_down(v, m):
    return max(m, (v // m) * m)


def _pick_tiles(B, R, C, itemsize, sublane, target_bytes):
    """Pick (tile_b, tile_r): x block ~= target_bytes, rows on native sublane tiling."""
    row_bytes = max(1, C * itemsize)
    budget_rows = max(1, target_bytes // row_bytes)       # tile_b * tile_r budget
    min_r = R if R < sublane else sublane                 # smallest legal row tile
    if B * min_r <= budget_rows:
        tile_b = B
    else:
        tile_b = max(1, budget_rows // min_r)
    per_b_rows = max(min_r, budget_rows // tile_b)
    if R <= per_b_rows:
        tile_r = R                                        # full dim -> always legal
    else:
        tile_r = _round_down(per_b_rows, sublane)
    # Give v7x's two TensorCores >=2 grid steps to split when it's big enough
    # to matter (degenerate 1x1 grid would leave one core idle).
    if (pl.cdiv(R, tile_r) * pl.cdiv(B, tile_b) < 2
            and tile_r > sublane
            and tile_b * tile_r * row_bytes > (2 << 20)):
        tile_r = _round_down(pl.cdiv(tile_r, 2), sublane)
    return tile_b, tile_r


# ----------------------------------------------------------------------------
# Wrapper
# ----------------------------------------------------------------------------
def positional_encoding_forward(x, pe, *, dropout_p=0.1, training=False, seed=0,
                                donate_x=False):
    """x: (B, S, D); pe: (max_len, D).  Returns dropout(x + pe[:S]), shape (B, S, D)."""
    B, S, D = x.shape
    max_len = pe.shape[0]
    assert S <= max_len, "sequence longer than positional-encoding table"

    if pe.dtype != x.dtype:
        # Prefer building pe in the compute dtype at init; this is a fallback.
        pe = pe.astype(x.dtype)

    # Lane-dense view of the (S, D) pair so output stores are full-lane vst.
    if D % 128 == 0:
        R, C = S, D
        x_view = x
        pe_view = pe[:S]
    elif (S * D) % 128 == 0:
        C = 128
        R = (S * D) // 128
        x_view = x.reshape(B, R, C)
        pe_view = pe[:S].reshape(R, C)
    else:
        # TODO(synk): last dim < 128 and not padded -> masked partial stores.
        R, C = S, D
        x_view = x
        pe_view = pe[:S]

    itemsize = x.dtype.itemsize
    sublane = max(8, 32 // itemsize)       # 8 f32, 16 bf16, 32 int8/fp8
    tile_b, tile_r = _pick_tiles(B, R, C, itemsize, sublane, _tile_target_bytes())

    grid = (pl.cdiv(R, tile_r), pl.cdiv(B, tile_b))   # batch innermost -> pe block resident
    x_index = lambda r, b, *_: (b, r, 0)              # *_ absorbs scalar-prefetch refs
    pe_index = lambda r, b, *_: (r, 0)                # ignores batch axis

    x_spec = pl.BlockSpec((tile_b, tile_r, C), x_index)
    pe_spec = pl.BlockSpec((tile_r, C), pe_index)
    out_spec = pl.BlockSpec((tile_b, tile_r, C), x_index)

    cparams = pltpu.CompilerParams(
        dimension_semantics=("parallel", "parallel"),
        vmem_limit_bytes=_vmem_limit_bytes(),
    )
    out_shape = jax.ShapeDtypeStruct((B, R, C), x.dtype)

    if not training or dropout_p == 0.0:
        # Eval mode: dropout is identity -> pure broadcast add.
        out = pl.pallas_call(
            _pe_add_kernel,
            out_shape=out_shape,
            grid_spec=pltpu.PrefetchScalarGridSpec(
                num_scalar_prefetch=0,
                grid=grid,
                in_specs=[x_spec, pe_spec],
                out_specs=out_spec,
            ),
            compiler_params=cparams,
            # In-place update of x (enable only when the caller no longer needs x).
            input_output_aliases=({0: 0} if donate_x else {}),
        )(x_view, pe_view)
        return out.reshape(B, S, D)

    p = float(dropout_p)
    keep_threshold = min(int(round(p * (1 << 32))), (1 << 32) - 1)
    kernel = functools.partial(
        _pe_add_dropout_kernel,
        rows_per_batch=R,
        row_width=C,
        keep_threshold=keep_threshold,
        scale=1.0 / (1.0 - p),
    )
    seed_arr = jnp.asarray([seed], dtype=jnp.int32)
    out = pl.pallas_call(
        kernel,
        out_shape=out_shape,
        grid_spec=pltpu.PrefetchScalarGridSpec(
            num_scalar_prefetch=1,          # seed rides in SMEM, no per-tile DMA
            grid=grid,
            in_specs=[x_spec, pe_spec],
            out_specs=out_spec,
        ),
        compiler_params=cparams,
        input_output_aliases=({1: 0} if donate_x else {}),   # operand 0 is the seed
    )(seed_arr, x_view, pe_view)
    return out.reshape(B, S, D)


# ----------------------------------------------------------------------------
# Demo / self-check
# ----------------------------------------------------------------------------
if __name__ == "__main__":
    B, S, D = 2, 8, 32
    MAX_LEN = 2000
    DROPOUT_P = 0.1
    SEED = 1234

    key = jax.random.PRNGKey(0)
    x = jax.random.normal(key, (B, S, D), dtype=jnp.float32)
    pe = build_positional_encoding(MAX_LEN, D, dtype=x.dtype)

    ref = x + pe[None, :S, :]

    # Eval-mode forward (dropout = identity), matches PyTorch module.eval().
    out_eval = positional_encoding_forward(x, pe, dropout_p=DROPOUT_P, training=False)
    out_eval = jax.block_until_ready(out_eval)
    assert out_eval.shape == (B, S, D)
    assert jnp.allclose(out_eval, ref, atol=1e-6), "eval-mode mismatch vs reference"

    # Training-mode forward: reproduce the (tiling-independent) mask on the host
    # and compare element-for-element.
    out_drop = positional_encoding_forward(
        x, pe, dropout_p=DROPOUT_P, training=True, seed=SEED
    )
    out_drop = jax.block_until_ready(out_drop)
    assert out_drop.shape == (B, S, D)

    keep_threshold = min(int(round(DROPOUT_P * (1 << 32))), (1 << 32) - 1)
    idx = jnp.arange(B * S * D, dtype=jnp.int32).reshape(B, S, D).astype(jnp.uint32)
    keep = _hash_u32(idx, jnp.uint32(SEED)) >= jnp.uint32(keep_threshold)
    expected = jnp.where(keep, ref * jnp.float32(1.0 / (1.0 - DROPOUT_P)),
                         jnp.zeros_like(ref))
    assert jnp.allclose(out_drop, expected, atol=1e-5), \
        "training-mode mismatch vs host-replicated dropout reference"

    print("KERNEL_OK")
</pallas_src>

<mosaic_0001>
module attributes {stable_mosaic.version = 11 : i64} {
  func.func @_pe_add_kernel(%arg0: i32, %arg1: i32, %arg2: memref<2x2x128xf32, #tpu.memory_space<vmem>>, %arg3: memref<2x128xf32, #tpu.memory_space<vmem>>, %arg4: memref<2x2x128xf32, #tpu.memory_space<vmem>>) attributes {dimension_semantics = [#tpu.dimension_semantics<parallel>, #tpu.dimension_semantics<parallel>], iteration_bounds = array<i64: 1, 1>, scalar_prefetch = 0 : i64, scratch_operands = 0 : i64, tpu.core_type = #tpu.core_type<tc>, window_params = [{transform_indices = @transform_0, window_bounds = array<i64: 2, 2, 128>}, {transform_indices = @transform_1, window_bounds = array<i64: 2, 128>}, {transform_indices = @transform_2, window_bounds = array<i64: 2, 2, 128>}]} {
    %c0 = arith.constant 0 : index
    %c0_0 = arith.constant 0 : index
    %c0_1 = arith.constant 0 : index
    %0 = vector.load %arg2[%c0, %c0_0, %c0_1] : memref<2x2x128xf32, #tpu.memory_space<vmem>>, vector<2x2x128xf32>
    %c0_2 = arith.constant 0 : index
    %c0_3 = arith.constant 0 : index
    %1 = vector.load %arg3[%c0_2, %c0_3] : memref<2x128xf32, #tpu.memory_space<vmem>>, vector<2x128xf32>
    %2 = vector.shape_cast %1 : vector<2x128xf32> to vector<1x2x128xf32>
    %3 = vector.broadcast %2 : vector<1x2x128xf32> to vector<2x2x128xf32>
    %4 = arith.addf %0, %3 : vector<2x2x128xf32>
    %c0_4 = arith.constant 0 : index
    %c0_5 = arith.constant 0 : index
    %c0_6 = arith.constant 0 : index
    %5 = vector.load %arg4[%c0_4, %c0_5, %c0_6] : memref<2x2x128xf32, #tpu.memory_space<vmem>>, vector<2x2x128xf32>
    tpu.vector_store %arg4[%c0_4, %c0_5, %c0_6], %4 {strides = array<i32>} : memref<2x2x128xf32, #tpu.memory_space<vmem>>, vector<2x2x128xf32>,
    return
  }
  func.func @transform_0(%arg0: i32, %arg1: i32) -> (i32, i32, i32) {
    %c0_i32 = arith.constant 0 : i32
    %c0_i32_0 = arith.constant 0 : i32
    return %arg1, %arg0, %c0_i32 : i32, i32, i32
  }
  func.func @transform_1(%arg0: i32, %arg1: i32) -> (i32, i32) {
    %c0_i32 = arith.constant 0 : i32
    %c0_i32_0 = arith.constant 0 : i32
    return %arg0, %c0_i32 : i32, i32
  }
  func.func @transform_2(%arg0: i32, %arg1: i32) -> (i32, i32, i32) {
    %c0_i32 = arith.constant 0 : i32
    %c0_i32_0 = arith.constant 0 : i32
    return %arg1, %arg0, %c0_i32 : i32, i32, i32
  }
}

</mosaic_0001>

<llo_original>
// kernel: tpu_custom_call.1
$region0: #{tpu_custom_call.1}
  #allocation0 [shape = 'u32[]', space=smem, size = 0x4, offset = 0x4, fixed_abs, tag = 'smem constant byte address 0x4 - core index']
  #allocation1 [shape = 'u32[144,128]{1,0:T(1,128)}', space=vmem, size = 0x12000, scoped, tag = 'internal scratch']
  %s0 = inlined_call_operand.hbm [shape: f32[2,2,128], index: 0, kind: input, shape index: {}]
  %s1 = inlined_call_operand.vmem [shape: f32[2,128], index: 1, kind: input, shape index: {}]
  %s2 = inlined_call_operand.hbm [shape: f32[2,2,128], index: 2, kind: output, shape index: {}]
  %s3 = sld [smem:[#allocation0]]
  $region22: #{tpu_custom_call.1} parent=0
    _
  %s5 = ssub.s32 1, %s3
  %s6 = scalar_select 0, %s5, %s3
  $region1: #{tpu_custom_call.1} parent=0
    #allocation2 [shape = 'u8[2048]{0}', space=vmem, size = 0x800, scoped, tag = 'input window, operand 0, single buffered']
    #allocation3 [shape = 's32[1]{0}', space=sflag, size = 0x4, scoped, tag = 'scoped memory for tpu_custom_call.1']
    #allocation4 [shape = 's32[1]{0}', space=sflag, size = 0x4, scoped, tag = 'scoped memory for tpu_custom_call.1']
    #allocation5 [shape = 'u8[2048]{0}', space=vmem, size = 0x800, scoped, tag = 'output window, operand 0, single buffered']
    %7 = vsyncpa [#allocation3], 0
    %8 = vsyncpa [#allocation4], 0
    // Predicated region
    $region2: #{tpu_custom_call.1} parent=1 // pred_check
      _
    $region3: #{tpu_custom_call.1} parent=1 // pred_check_branch
      %10 = sbr.rel (0) target = $region5
    $region4: #{tpu_custom_call.1} parent=1 // pred_region
      %s12 = ssub.s32 64, 64
      %13 = vsyncadd [#allocation3], %s12
      %s14 = sshll.u32 [#allocation2], 4
      %s15 = int_to_ptr.vmem [resolvable:$true] %s14
      %20 = dma.hbm_to_vmem [thread:$0]  %s0, 64, %s15, [#allocation3], 32, 32, 2
    $region5: #{tpu_custom_call.1} parent=1 // pred_fallthru
      _
    // Predicated region
    $region6: #{tpu_custom_call.1} parent=1 // pred_check
      _
    $region7: #{tpu_custom_call.1} parent=1 // pred_check_branch
      %22 = sbr.rel (0) target = $region9
    $region8: #{tpu_custom_call.1} parent=1 // pred_region
      _
    $region9: #{tpu_custom_call.1} parent=1 // pred_fallthru
      _
    // Predicated region
    $region10: #{tpu_custom_call.1} parent=1 // pred_check
      _
    $region11: #{tpu_custom_call.1} parent=1 // pred_check_branch
      %24 = sbr.rel (0) target = $region13
    $region12: #{tpu_custom_call.1} parent=1 // pred_region
      %25 = dma.done [#allocation3], 64
    $region13: #{tpu_custom_call.1} parent=1 // pred_fallthru
      _
    %v26 = vld [vmem:[#allocation2] sm:$0x3]
    %v27 = vld [vmem:[#allocation2 + $0x2] sm:$0x3]
    %v28 = vld [vmem:[%s1] sm:$0x3]
    %v29 = vadd.f32 %v26, %v28
    %v30 = vadd.f32 %v27, %v28
    %31 = vst [vmem:[#allocation5] sm:$0x3] %v29
    %32 = vst [vmem:[#allocation5 + $0x2] sm:$0x3] %v30
    // Predicated region
    $region14: #{tpu_custom_call.1} parent=1 // pred_check
      _
    $region15: #{tpu_custom_call.1} parent=1 // pred_check_branch
      %34 = sbr.rel (0) target = $region17
    $region16: #{tpu_custom_call.1} parent=1 // pred_region
      %s36 = ssub.s32 64, 64
      %37 = vsyncadd [#allocation4], %s36
      %s38 = sshll.u32 [#allocation5], 4
      %s39 = int_to_ptr.vmem [resolvable:$true] %s38
      %44 = dma.vmem_to_hbm [thread:$0]  %s39, 64, %s2, [#allocation4], 32, 32, 2
    $region17: #{tpu_custom_call.1} parent=1 // pred_fallthru
      _
    // Predicated region
    $region18: #{tpu_custom_call.1} parent=1 // pred_check
      _
    $region19: #{tpu_custom_call.1} parent=1 // pred_check_branch
      %46 = sbr.rel (0) target = $region21
    $region20: #{tpu_custom_call.1} parent=1 // pred_region
      %47 = dma.done [#allocation4], 64
    $region21: #{tpu_custom_call.1} parent=1 // pred_fallthru
      _
    %48 = vsyncpa [#allocation3], 1
    %49 = vsyncpa [#allocation4], 1

</llo_original>
